<compile_context>
chip_gen: v7x
topology: tpu7x:2x2x1
jax: 0.10.0
libtpu: 0.0.40
codegen_flags: <defaults>
</compile_context>

<pallas_src>
import functools

import jax
import jax.numpy as jnp
from jax.experimental import pallas as pl
from jax.experimental.pallas import tpu as pltpu


def _round_up(n, m):
    return ((n + m - 1) // m) * m


def _vmem_config():
    """Per-generation VMEM limit and per-grid-step byte budget."""
    cap = 64 * 1024 * 1024                     # conservative (v7x-sized) fallback
    try:
        cap = int(pltpu.get_tpu_info().vmem_capacity_bytes)
    except Exception:
        pass
    vmem_limit = min(cap * 3 // 4, 100 * 1024 * 1024)   # 96 MiB on v5e/v6e, 48 MiB on v7x
    step_budget = max(2 * 1024 * 1024, vmem_limit // 6)  # ~16 MiB / ~8 MiB per step
    return int(vmem_limit), int(step_budget)


_LANE_TILE_CANDIDATES = (16384, 8192, 4096, 2048, 1024, 512, 256, 128)


def _pick_lane_tile(total_lanes, bytes_per_lane, budget, candidates=_LANE_TILE_CANDIDATES):
    for t in candidates:
        if total_lanes % t == 0 and t * bytes_per_lane <= budget:
            return t
    # 128 always divides (arrays are padded to multiples of 128); budget safety at
    # 128 lanes is guaranteed by _pick_batch_tile splitting B into the grid.
    return 128


def _pick_batch_tile(B, fixed_bytes_per_lane, per_b_bytes_per_lane, budget):
    """Largest batch tile (full B, or a multiple of 8 dividing B — keeps the
    (8,128) block constraint) such that a 128-lane step fits the budget."""
    cands = [B] + [d for d in (64, 32, 16, 8) if d < B and B % d == 0]
    for bt in cands:
        if 128 * (fixed_bytes_per_lane + bt * per_b_bytes_per_lane) <= budget:
            return bt
    return cands[-1]


def _pick_sub_lanes(tile, sublane_rows, n_live_values, max_vregs=24):
    """Lane width of the register-resident inner chunk so live accumulators /
    operands stay well below the 64-vreg register file (no spill/refill)."""
    sub = (max_vregs * 128) // max(1, n_live_values * sublane_rows)
    sub = max(128, min(tile, (sub // 128) * 128))
    while tile % sub != 0:
        sub -= 128
    return max(sub, 128)


# ----------------------------------------------------------------------------
# Pallas kernel 1: complex spectral channel-mix, gridded over (R, B-tiles, M-tiles).
#   out[b, o, m] = sum_i x[i, b, m] * w[i, o, m]   (complex, per corner r)
# Layouts:
#   x:   (R, Ci, B,  Mp)   real / imag float32   (channel leads -> contiguous slabs)
#   w:   (R, Ci, Co, Mp)   real / imag float32
#   out: (R, B,  Co, Mp)   real / imag float32
# ----------------------------------------------------------------------------
def _spectral_mul_kernel(xr_ref, xi_ref, wr_ref, wi_ref, or_ref, oi_ref, *, sub_m):
    _, ci, bt, tm = xr_ref.shape
    co = wr_ref.shape[2]
    n_sub = tm // sub_m

    # TODO(synk): for wide FNOs (Ci >= ~16) switch to the 3-multiply (Gauss) complex
    # product with pre-summed weights (ws=wr+wi, wd=wi-wr) to cut VALU work ~12%
    # when compute-bound; skipped here because the extra weight traffic hurts the
    # DMA-bound small-C case.
    for s in range(n_sub):                         # static, small (<= 16)
        s0 = s * sub_m
        acc_r = jnp.zeros((bt, co, sub_m), jnp.float32)
        acc_i = jnp.zeros((bt, co, sub_m), jnp.float32)
        for i in range(ci):                        # Ci (= width) is small here
            xr_i = xr_ref[0, i, :, pl.ds(s0, sub_m)][:, None, :]   # (bt, 1, sub)
            xi_i = xi_ref[0, i, :, pl.ds(s0, sub_m)][:, None, :]
            wr_i = wr_ref[0, i, :, pl.ds(s0, sub_m)][None, :, :]   # (1, co, sub)
            wi_i = wi_ref[0, i, :, pl.ds(s0, sub_m)][None, :, :]
            # (x_r + i x_i)(w_r + i w_i) = (x_r w_r - x_i w_i) + i(x_r w_i + x_i w_r)
            acc_r = acc_r + xr_i * wr_i - xi_i * wi_i
            acc_i = acc_i + xr_i * wi_i + xi_i * wr_i
        or_ref[0, :, :, pl.ds(s0, sub_m)] = acc_r
        oi_ref[0, :, :, pl.ds(s0, sub_m)] = acc_i


def spectral_multiply(xr, xi, wr, wi, *, bt, tile_m, sub_m, vmem_limit):
    R, Ci, B, Mp = xr.shape
    Co = wr.shape[2]
    grid = (R, B // bt, Mp // tile_m)

    flops = R * B * Co * Ci * Mp * 8
    bytes_accessed = 4 * R * Mp * (2 * B * Ci + 2 * Ci * Co + 2 * B * Co)

    kernel = functools.partial(_spectral_mul_kernel, sub_m=sub_m)
    x_spec = pl.BlockSpec((1, Ci, bt, tile_m), lambda r, b, mt: (r, 0, b, mt))
    w_spec = pl.BlockSpec((1, Ci, Co, tile_m), lambda r, b, mt: (r, 0, 0, mt))
    o_spec = pl.BlockSpec((1, bt, Co, tile_m), lambda r, b, mt: (r, b, 0, mt))

    return pl.pallas_call(
        kernel,
        out_shape=(
            jax.ShapeDtypeStruct((R, B, Co, Mp), jnp.float32),
            jax.ShapeDtypeStruct((R, B, Co, Mp), jnp.float32),
        ),
        grid=grid,
        in_specs=[x_spec, x_spec, w_spec, w_spec],
        out_specs=(o_spec, o_spec),
        compiler_params=pltpu.CompilerParams(
            dimension_semantics=("parallel", "parallel", "parallel"),
            vmem_limit_bytes=vmem_limit,
        ),
        cost_estimate=pl.CostEstimate(
            flops=flops, transcendentals=0, bytes_accessed=bytes_accessed
        ),
    )(xr, xi, wr, wi)


# ----------------------------------------------------------------------------
# Pallas kernel 2: 1x1 Conv1d (channel mixing) + spectral-branch add + ReLU.
#   out[b, o, n] = relu( sum_i W[o, i] * x[b, i, n] + bias[o] + sup[b, o, n] )
# Block = (Bt, C, TILE_N); grid = (N-tiles, B-tiles) with the long N axis leading.
# ----------------------------------------------------------------------------
def _conv_add_relu_kernel(x_ref, sup_ref, w_ref, b_ref, o_ref, *, use_mxu, sub_n):
    bt, C, tn = o_ref.shape
    n_sub = tn // sub_n
    bias = b_ref[...]                              # (C, 1)
    if use_mxu:
        w = w_ref[...]                             # (C, C)  (out, in)
        wcols = None
    else:
        w = None
        # Pre-broadcast weight columns (Ci, Co, 1): no per-channel lane extract.
        wcols = [w_ref[i] for i in range(C)]       # each (C, 1)

    def do_chunk(b, s0):
        xs = x_ref[b, :, pl.ds(s0, sub_n)]         # (C, sub)
        ss = sup_ref[b, :, pl.ds(s0, sub_n)]
        if use_mxu:
            y = jnp.dot(w, xs, preferred_element_type=jnp.float32) + bias + ss
        else:
            y = ss + bias
            for i in range(C):
                y = y + wcols[i] * xs[i:i + 1, :]
        o_ref[b, :, pl.ds(s0, sub_n)] = jnp.maximum(y, 0.0).astype(o_ref.dtype)

    for b in range(bt):
        if n_sub <= 16:
            for s in range(n_sub):
                do_chunk(b, s * sub_n)
        else:
            def body(s, carry, _b=b):
                do_chunk(_b, pl.multiple_of(s * sub_n, sub_n))
                return carry
            jax.lax.fori_loop(0, n_sub, body, 0)


def conv_add_relu(x_flat, sup_flat, w_op, b2d, *, bt, tile_n, sub_n, use_mxu, vmem_limit):
    B, C, Np = x_flat.shape
    grid = (Np // tile_n, B // bt)                 # long N axis leads (v7x 2-TC balance)

    flops = B * Np * (2 * C * C + 3 * C)
    bytes_accessed = 4 * (3 * B * C * Np + C * C + C)

    kernel = functools.partial(_conv_add_relu_kernel, use_mxu=use_mxu, sub_n=sub_n)
    act_spec = pl.BlockSpec((bt, C, tile_n), lambda nt, b: (b, 0, nt))
    if use_mxu:
        w_spec = pl.BlockSpec((C, C), lambda nt, b: (0, 0))
    else:
        w_spec = pl.BlockSpec((C, C, 1), lambda nt, b: (0, 0, 0))

    return pl.pallas_call(
        kernel,
        out_shape=jax.ShapeDtypeStruct((B, C, Np), jnp.float32),
        grid=grid,
        in_specs=[act_spec, act_spec, w_spec,
                  pl.BlockSpec((C, 1), lambda nt, b: (0, 0))],
        out_specs=act_spec,
        compiler_params=pltpu.CompilerParams(
            dimension_semantics=("parallel", "parallel"),
            vmem_limit_bytes=vmem_limit,
        ),
        cost_estimate=pl.CostEstimate(
            flops=flops, transcendentals=0, bytes_accessed=bytes_accessed
        ),
    )(x_flat, sup_flat, w_op, b2d)


# ----------------------------------------------------------------------------
# out_ft assembly without zeros + 4 dynamic-update-slice scatters.
# ----------------------------------------------------------------------------
def _assemble_out_ft(c1, c2, c3, c4, X, Y, Zr, modes):
    m0, m1, m2 = modes
    assert 2 * m0 <= X and 2 * m1 <= Y and m2 <= Zr, "modes must be <= N/2 (and Z//2+1)"
    B, C = c1.shape[0], c1.shape[1]
    dtype = c1.dtype
    zy = jnp.zeros((B, C, m0, Y - 2 * m1, m2), dtype)
    row_lo = jnp.concatenate([c1, zy, c3], axis=3)           # x-low : (B,C,m0,Y,m2)
    row_hi = jnp.concatenate([c2, zy, c4], axis=3)           # x-high: (B,C,m0,Y,m2)
    zx = jnp.zeros((B, C, X - 2 * m0, Y, m2), dtype)
    full = jnp.concatenate([row_lo, zx, row_hi], axis=2)     # (B,C,X,Y,m2)
    return jnp.pad(full, ((0, 0), (0, 0), (0, 0), (0, 0), (0, Zr - m2)))


# ----------------------------------------------------------------------------
# One-time parameter preprocessing (hoisted out of the forward).
# ----------------------------------------------------------------------------
def prepare_params(params, modes):
    m0, m1, m2 = modes
    M = m0 * m1 * m2
    Mp = _round_up(M, 128)

    w = jnp.stack([params["w1"], params["w2"], params["w3"], params["w4"]], axis=0)
    R, Ci, Co = w.shape[0], w.shape[1], w.shape[2]
    w = w.reshape(R, Ci, Co, M)                               # (R, Ci, Co, M)
    wr = jnp.real(w).astype(jnp.float32)
    wi = jnp.imag(w).astype(jnp.float32)
    if Mp != M:
        pad = ((0, 0), (0, 0), (0, 0), (0, Mp - M))
        wr = jnp.pad(wr, pad)
        wi = jnp.pad(wi, pad)

    conv_w = params["conv_w"].astype(jnp.float32)             # (out, in)
    C = conv_w.shape[0]
    return {
        "wr": wr, "wi": wi, "M": M, "Mp": Mp,
        "conv_w": conv_w,
        "conv_wcol": jnp.transpose(conv_w)[:, :, None],        # (in, out, 1)
        "conv_b2d": params["conv_b"].astype(jnp.float32).reshape(C, 1),
    }


# ----------------------------------------------------------------------------
# FourierLayerBlock forward (norm=None, like the module default)
# ----------------------------------------------------------------------------
def fourier_layer_block(x, prepared, modes):
    B, C, X, Y, Z = x.shape
    m0, m1, m2 = modes
    Zr = Z // 2 + 1
    M = m0 * m1 * m2
    Mp = prepared["Mp"]
    vmem_limit, step_budget = _vmem_config()

    # ---- spectral branch (SpectralConv3D) ----
    # TODO(synk): rfftn/irfftn have no Pallas TPU equivalent; done with jnp.fft.
    x_ft = jnp.fft.rfftn(x, axes=(-3, -2, -1))                # (B, C, X, Y, Zr) complex64

    c1 = x_ft[:, :, :m0, :m1, :m2]
    c2 = x_ft[:, :, X - m0:, :m1, :m2]
    c3 = x_ft[:, :, :m0, Y - m1:, :m2]
    c4 = x_ft[:, :, X - m0:, Y - m1:, :m2]
    # (R, Ci, B, M): channel leads so the kernel reads contiguous (B, lanes) slabs
    # per input channel (no sublane extract inside the Ci loop).
    x_corners = jnp.stack([c1, c2, c3, c4], axis=0).reshape(4, B, C, M)
    x_corners = jnp.transpose(x_corners, (0, 2, 1, 3))
    xr = jnp.real(x_corners).astype(jnp.float32)
    xi = jnp.imag(x_corners).astype(jnp.float32)
    if Mp != M:
        pad_m = ((0, 0), (0, 0), (0, 0), (0, Mp - M))
        xr = jnp.pad(xr, pad_m)
        xi = jnp.pad(xi, pad_m)

    fixed_bpl = 4 * 2 * C * C                                 # weights (re+im) / lane
    per_b_bpl = 4 * 2 * (C + C)                               # x + out (re+im) / batch / lane
    bt_s = _pick_batch_tile(B, fixed_bpl, per_b_bpl, step_budget)
    tile_m = _pick_lane_tile(Mp, fixed_bpl + bt_s * per_b_bpl, step_budget,
                             candidates=(2048, 1024, 512, 256, 128))
    sub_m = _pick_sub_lanes(tile_m, bt_s * (_round_up(C, 8) // 8), 3)

    out_r, out_i = spectral_multiply(
        xr, xi, prepared["wr"], prepared["wi"],
        bt=bt_s, tile_m=tile_m, sub_m=sub_m, vmem_limit=vmem_limit)
    out_c = jax.lax.complex(out_r[..., :M], out_i[..., :M]).reshape(
        4, B, C, m0, m1, m2)

    out_ft = _assemble_out_ft(out_c[0], out_c[1], out_c[2], out_c[3], X, Y, Zr, modes)
    x_sup = jnp.fft.irfftn(out_ft, s=(X, Y, Z), axes=(-3, -2, -1)).astype(jnp.float32)

    # ---- pointwise branch (Conv1d k=1) + residual add + ReLU, fused & tiled ----
    N = X * Y * Z
    Np = _round_up(N, 128)
    x_flat = x.reshape(B, C, N).astype(jnp.float32)
    sup_flat = x_sup.reshape(B, C, N)
    if Np != N:                                   # skip full-tensor pad copies when aligned
        pad_n = ((0, 0), (0, 0), (0, Np - N))
        x_flat = jnp.pad(x_flat, pad_n)
        sup_flat = jnp.pad(sup_flat, pad_n)

    use_mxu = C >= 16
    per_b_bpl_c = 4 * 3 * C                       # x + sup + out per batch per lane
    bt_c = _pick_batch_tile(B, 0, per_b_bpl_c, step_budget)
    tile_n = _pick_lane_tile(Np, bt_c * per_b_bpl_c, step_budget)
    sub_n = _pick_sub_lanes(tile_n, _round_up(C, 8) // 8, 3)

    w_op = prepared["conv_w"] if use_mxu else prepared["conv_wcol"]
    out = conv_add_relu(x_flat, sup_flat, w_op, prepared["conv_b2d"],
                        bt=bt_c, tile_n=tile_n, sub_n=sub_n,
                        use_mxu=use_mxu, vmem_limit=vmem_limit)
    if Np != N:
        out = out[:, :, :N]
    return out.reshape(B, C, X, Y, Z)


# ----------------------------------------------------------------------------
# Pure-JAX reference (mirrors the PyTorch forward) for a correctness check.
# ----------------------------------------------------------------------------
def reference(x, params, modes):
    B, C, X, Y, Z = x.shape
    m0, m1, m2 = modes
    x_ft = jnp.fft.rfftn(x, axes=(-3, -2, -1))
    out_ft = jnp.zeros((B, C, X, Y, Z // 2 + 1), dtype=x_ft.dtype)

    def mul(inp, w):
        return jnp.einsum("bixyz,ioxyz->boxyz", inp, w)

    out_ft = out_ft.at[:, :, :m0, :m1, :m2].set(mul(x_ft[:, :, :m0, :m1, :m2], params["w1"]))
    out_ft = out_ft.at[:, :, X - m0:, :m1, :m2].set(mul(x_ft[:, :, X - m0:, :m1, :m2], params["w2"]))
    out_ft = out_ft.at[:, :, :m0, Y - m1:, :m2].set(mul(x_ft[:, :, :m0, Y - m1:, :m2], params["w3"]))
    out_ft = out_ft.at[:, :, X - m0:, Y - m1:, :m2].set(mul(x_ft[:, :, X - m0:, Y - m1:, :m2], params["w4"]))
    x_sup = jnp.fft.irfftn(out_ft, s=(X, Y, Z), axes=(-3, -2, -1))

    x_inf = jnp.einsum("oi,bin->bon", params["conv_w"], x.reshape(B, C, -1))
    x_inf = x_inf + params["conv_b"][None, :, None]
    x_inf = x_inf.reshape(B, C, X, Y, Z)
    return jnp.maximum(x_sup + x_inf, 0.0)


if __name__ == "__main__":
    B, C, X, Y, Z = 2, 4, 16, 16, 8          # width = 4
    modes = (4, 4, 4)                        # <= (X/2, Y/2, Z//2+1)

    key = jax.random.PRNGKey(0)
    keys = jax.random.split(key, 11)
    scale = 1.0 / (C * C)

    def complex_w(kr, ki):
        re = jax.random.uniform(kr, (C, C) + modes, dtype=jnp.float32)
        im = jax.random.uniform(ki, (C, C) + modes, dtype=jnp.float32)
        return (scale * jax.lax.complex(re, im)).astype(jnp.complex64)

    params = {
        "w1": complex_w(keys[0], keys[1]),
        "w2": complex_w(keys[2], keys[3]),
        "w3": complex_w(keys[4], keys[5]),
        "w4": complex_w(keys[6], keys[7]),
        # Conv1d(width, width, 1): weight (out, in), bias (out,)
        "conv_w": jax.random.uniform(keys[8], (C, C), jnp.float32, -0.5, 0.5),
        "conv_b": jax.random.uniform(keys[9], (C,), jnp.float32, -0.5, 0.5),
    }
    x = jax.random.normal(keys[10], (B, C, X, Y, Z), dtype=jnp.float32)

    prepared = prepare_params(params, modes)

    out = jax.block_until_ready(fourier_layer_block(x, prepared, modes))
    ref = jax.block_until_ready(reference(x, params, modes))

    assert out.shape == (B, C, X, Y, Z)
    assert jnp.allclose(out, ref, atol=1e-4, rtol=1e-4), float(jnp.max(jnp.abs(out - ref)))
    print("KERNEL_OK")
</pallas_src>

<mosaic_0001>
module attributes {stable_mosaic.version = 11 : i64} {
  func.func @_spectral_mul_kernel(%arg0: i32, %arg1: i32, %arg2: i32, %arg3: memref<1x4x2x128xf32, #tpu.memory_space<vmem>>, %arg4: memref<1x4x2x128xf32, #tpu.memory_space<vmem>>, %arg5: memref<1x4x4x128xf32, #tpu.memory_space<vmem>>, %arg6: memref<1x4x4x128xf32, #tpu.memory_space<vmem>>, %arg7: memref<1x2x4x128xf32, #tpu.memory_space<vmem>>, %arg8: memref<1x2x4x128xf32, #tpu.memory_space<vmem>>) attributes {dimension_semantics = [#tpu.dimension_semantics<parallel>, #tpu.dimension_semantics<parallel>, #tpu.dimension_semantics<parallel>], iteration_bounds = array<i64: 4, 1, 1>, scalar_prefetch = 0 : i64, scratch_operands = 0 : i64, tpu.core_type = #tpu.core_type<tc>, window_params = [{transform_indices = @transform_0, window_bounds = array<i64: 1, 4, 2, 128>}, {transform_indices = @transform_1, window_bounds = array<i64: 1, 4, 2, 128>}, {transform_indices = @transform_2, window_bounds = array<i64: 1, 4, 4, 128>}, {transform_indices = @transform_3, window_bounds = array<i64: 1, 4, 4, 128>}, {transform_indices = @transform_4, window_bounds = array<i64: 1, 2, 4, 128>}, {transform_indices = @transform_5, window_bounds = array<i64: 1, 2, 4, 128>}]} {
    %cst = arith.constant 0.000000e+00 : f32
    %0 = vector.broadcast %cst : f32 to vector<2x4x128xf32>
    %cst_0 = arith.constant 0.000000e+00 : f32
    %1 = vector.broadcast %cst_0 : f32 to vector<2x4x128xf32>
    %c0 = arith.constant 0 : index
    %c0_1 = arith.constant 0 : index
    %c0_2 = arith.constant 0 : index
    %c0_3 = arith.constant 0 : index
    %2 = vector.load %arg3[%c0, %c0_1, %c0_2, %c0_3] : memref<1x4x2x128xf32, #tpu.memory_space<vmem>>, vector<1x1x2x128xf32>
    %3 = vector.shape_cast %2 : vector<1x1x2x128xf32> to vector<2x128xf32>
    %4 = vector.shape_cast %3 : vector<2x128xf32> to vector<2x1x128xf32>
    %c0_4 = arith.constant 0 : index
    %c0_5 = arith.constant 0 : index
    %c0_6 = arith.constant 0 : index
    %c0_7 = arith.constant 0 : index
    %5 = vector.load %arg4[%c0_4, %c0_5, %c0_6, %c0_7] : memref<1x4x2x128xf32, #tpu.memory_space<vmem>>, vector<1x1x2x128xf32>
    %6 = vector.shape_cast %5 : vector<1x1x2x128xf32> to vector<2x128xf32>
    %7 = vector.shape_cast %6 : vector<2x128xf32> to vector<2x1x128xf32>
    %c0_8 = arith.constant 0 : index
    %c0_9 = arith.constant 0 : index
    %c0_10 = arith.constant 0 : index
    %c0_11 = arith.constant 0 : index
    %8 = vector.load %arg5[%c0_8, %c0_9, %c0_10, %c0_11] : memref<1x4x4x128xf32, #tpu.memory_space<vmem>>, vector<1x1x4x128xf32>
    %9 = vector.shape_cast %8 : vector<1x1x4x128xf32> to vector<4x128xf32>
    %10 = vector.shape_cast %9 : vector<4x128xf32> to vector<1x4x128xf32>
    %c0_12 = arith.constant 0 : index
    %c0_13 = arith.constant 0 : index
    %c0_14 = arith.constant 0 : index
    %c0_15 = arith.constant 0 : index
    %11 = vector.load %arg6[%c0_12, %c0_13, %c0_14, %c0_15] : memref<1x4x4x128xf32, #tpu.memory_space<vmem>>, vector<1x1x4x128xf32>
    %12 = vector.shape_cast %11 : vector<1x1x4x128xf32> to vector<4x128xf32>
    %13 = vector.shape_cast %12 : vector<4x128xf32> to vector<1x4x128xf32>
    %14 = vector.broadcast %4 : vector<2x1x128xf32> to vector<2x4x128xf32>
    %15 = vector.broadcast %10 : vector<1x4x128xf32> to vector<2x4x128xf32>
    %16 = arith.mulf %14, %15 : vector<2x4x128xf32>
    %17 = arith.addf %0, %16 : vector<2x4x128xf32>
    %18 = vector.broadcast %7 : vector<2x1x128xf32> to vector<2x4x128xf32>
    %19 = vector.broadcast %13 : vector<1x4x128xf32> to vector<2x4x128xf32>
    %20 = arith.mulf %18, %19 : vector<2x4x128xf32>
    %21 = arith.subf %17, %20 : vector<2x4x128xf32>
    %22 = vector.broadcast %4 : vector<2x1x128xf32> to vector<2x4x128xf32>
    %23 = vector.broadcast %13 : vector<1x4x128xf32> to vector<2x4x128xf32>
    %24 = arith.mulf %22, %23 : vector<2x4x128xf32>
    %25 = arith.addf %1, %24 : vector<2x4x128xf32>
    %26 = vector.broadcast %7 : vector<2x1x128xf32> to vector<2x4x128xf32>
    %27 = vector.broadcast %10 : vector<1x4x128xf32> to vector<2x4x128xf32>
    %28 = arith.mulf %26, %27 : vector<2x4x128xf32>
    %29 = arith.addf %25, %28 : vector<2x4x128xf32>
    %c0_16 = arith.constant 0 : index
    %c1 = arith.constant 1 : index
    %c0_17 = arith.constant 0 : index
    %c0_18 = arith.constant 0 : index
    %30 = vector.load %arg3[%c0_16, %c1, %c0_17, %c0_18] : memref<1x4x2x128xf32, #tpu.memory_space<vmem>>, vector<1x1x2x128xf32>
    %31 = vector.shape_cast %30 : vector<1x1x2x128xf32> to vector<2x128xf32>
    %32 = vector.shape_cast %31 : vector<2x128xf32> to vector<2x1x128xf32>
    %c0_19 = arith.constant 0 : index
    %c1_20 = arith.constant 1 : index
    %c0_21 = arith.constant 0 : index
    %c0_22 = arith.constant 0 : index
    %33 = vector.load %arg4[%c0_19, %c1_20, %c0_21, %c0_22] : memref<1x4x2x128xf32, #tpu.memory_space<vmem>>, vector<1x1x2x128xf32>
    %34 = vector.shape_cast %33 : vector<1x1x2x128xf32> to vector<2x128xf32>
    %35 = vector.shape_cast %34 : vector<2x128xf32> to vector<2x1x128xf32>
    %c0_23 = arith.constant 0 : index
    %c1_24 = arith.constant 1 : index
    %c0_25 = arith.constant 0 : index
    %c0_26 = arith.constant 0 : index
    %36 = vector.load %arg5[%c0_23, %c1_24, %c0_25, %c0_26] : memref<1x4x4x128xf32, #tpu.memory_space<vmem>>, vector<1x1x4x128xf32>
    %37 = vector.shape_cast %36 : vector<1x1x4x128xf32> to vector<4x128xf32>
    %38 = vector.shape_cast %37 : vector<4x128xf32> to vector<1x4x128xf32>
    %c0_27 = arith.constant 0 : index
    %c1_28 = arith.constant 1 : index
    %c0_29 = arith.constant 0 : index
    %c0_30 = arith.constant 0 : index
    %39 = vector.load %arg6[%c0_27, %c1_28, %c0_29, %c0_30] : memref<1x4x4x128xf32, #tpu.memory_space<vmem>>, vector<1x1x4x128xf32>
    %40 = vector.shape_cast %39 : vector<1x1x4x128xf32> to vector<4x128xf32>
    %41 = vector.shape_cast %40 : vector<4x128xf32> to vector<1x4x128xf32>
    %42 = vector.broadcast %32 : vector<2x1x128xf32> to vector<2x4x128xf32>
    %43 = vector.broadcast %38 : vector<1x4x128xf32> to vector<2x4x128xf32>
    %44 = arith.mulf %42, %43 : vector<2x4x128xf32>
    %45 = arith.addf %21, %44 : vector<2x4x128xf32>
    %46 = vector.broadcast %35 : vector<2x1x128xf32> to vector<2x4x128xf32>
    %47 = vector.broadcast %41 : vector<1x4x128xf32> to vector<2x4x128xf32>
    %48 = arith.mulf %46, %47 : vector<2x4x128xf32>
    %49 = arith.subf %45, %48 : vector<2x4x128xf32>
    %50 = vector.broadcast %32 : vector<2x1x128xf32> to vector<2x4x128xf32>
    %51 = vector.broadcast %41 : vector<1x4x128xf32> to vector<2x4x128xf32>
    %52 = arith.mulf %50, %51 : vector<2x4x128xf32>
    %53 = arith.addf %29, %52 : vector<2x4x128xf32>
    %54 = vector.broadcast %35 : vector<2x1x128xf32> to vector<2x4x128xf32>
    %55 = vector.broadcast %38 : vector<1x4x128xf32> to vector<2x4x128xf32>
    %56 = arith.mulf %54, %55 : vector<2x4x128xf32>
    %57 = arith.addf %53, %56 : vector<2x4x128xf32>
    %c0_31 = arith.constant 0 : index
    %c2 = arith.constant 2 : index
    %c0_32 = arith.constant 0 : index
    %c0_33 = arith.constant 0 : index
    %58 = vector.load %arg3[%c0_31, %c2, %c0_32, %c0_33] : memref<1x4x2x128xf32, #tpu.memory_space<vmem>>, vector<1x1x2x128xf32>
    %59 = vector.shape_cast %58 : vector<1x1x2x128xf32> to vector<2x128xf32>
    %60 = vector.shape_cast %59 : vector<2x128xf32> to vector<2x1x128xf32>
    %c0_34 = arith.constant 0 : index
    %c2_35 = arith.constant 2 : index
    %c0_36 = arith.constant 0 : index
    %c0_37 = arith.constant 0 : index
    %61 = vector.load %arg4[%c0_34, %c2_35, %c0_36, %c0_37] : memref<1x4x2x128xf32, #tpu.memory_space<vmem>>, vector<1x1x2x128xf32>
    %62 = vector.shape_cast %61 : vector<1x1x2x128xf32> to vector<2x128xf32>
    %63 = vector.shape_cast %62 : vector<2x128xf32> to vector<2x1x128xf32>
    %c0_38 = arith.constant 0 : index
    %c2_39 = arith.constant 2 : index
    %c0_40 = arith.constant 0 : index
    %c0_41 = arith.constant 0 : index
    %64 = vector.load %arg5[%c0_38, %c2_39, %c0_40, %c0_41] : memref<1x4x4x128xf32, #tpu.memory_space<vmem>>, vector<1x1x4x128xf32>
    %65 = vector.shape_cast %64 : vector<1x1x4x128xf32> to vector<4x128xf32>
    %66 = vector.shape_cast %65 : vector<4x128xf32> to vector<1x4x128xf32>
    %c0_42 = arith.constant 0 : index
    %c2_43 = arith.constant 2 : index
    %c0_44 = arith.constant 0 : index
    %c0_45 = arith.constant 0 : index
    %67 = vector.load %arg6[%c0_42, %c2_43, %c0_44, %c0_45] : memref<1x4x4x128xf32, #tpu.memory_space<vmem>>, vector<1x1x4x128xf32>
    %68 = vector.shape_cast %67 : vector<1x1x4x128xf32> to vector<4x128xf32>
    %69 = vector.shape_cast %68 : vector<4x128xf32> to vector<1x4x128xf32>
    %70 = vector.broadcast %60 : vector<2x1x128xf32> to vector<2x4x128xf32>
    %71 = vector.broadcast %66 : vector<1x4x128xf32> to vector<2x4x128xf32>
    %72 = arith.mulf %70, %71 : vector<2x4x128xf32>
    %73 = arith.addf %49, %72 : vector<2x4x128xf32>
    %74 = vector.broadcast %63 : vector<2x1x128xf32> to vector<2x4x128xf32>
    %75 = vector.broadcast %69 : vector<1x4x128xf32> to vector<2x4x128xf32>
    %76 = arith.mulf %74, %75 : vector<2x4x128xf32>
    %77 = arith.subf %73, %76 : vector<2x4x128xf32>
    %78 = vector.broadcast %60 : vector<2x1x128xf32> to vector<2x4x128xf32>
    %79 = vector.broadcast %69 : vector<1x4x128xf32> to vector<2x4x128xf32>
    %80 = arith.mulf %78, %79 : vector<2x4x128xf32>
    %81 = arith.addf %57, %80 : vector<2x4x128xf32>
    %82 = vector.broadcast %63 : vector<2x1x128xf32> to vector<2x4x128xf32>
    %83 = vector.broadcast %66 : vector<1x4x128xf32> to vector<2x4x128xf32>
    %84 = arith.mulf %82, %83 : vector<2x4x128xf32>
    %85 = arith.addf %81, %84 : vector<2x4x128xf32>
    %c0_46 = arith.constant 0 : index
    %c3 = arith.constant 3 : index
    %c0_47 = arith.constant 0 : index
    %c0_48 = arith.constant 0 : index
    %86 = vector.load %arg3[%c0_46, %c3, %c0_47, %c0_48] : memref<1x4x2x128xf32, #tpu.memory_space<vmem>>, vector<1x1x2x128xf32>
    %87 = vector.shape_cast %86 : vector<1x1x2x128xf32> to vector<2x128xf32>
    %88 = vector.shape_cast %87 : vector<2x128xf32> to vector<2x1x128xf32>
    %c0_49 = arith.constant 0 : index
    %c3_50 = arith.constant 3 : index
    %c0_51 = arith.constant 0 : index
    %c0_52 = arith.constant 0 : index
    %89 = vector.load %arg4[%c0_49, %c3_50, %c0_51, %c0_52] : memref<1x4x2x128xf32, #tpu.memory_space<vmem>>, vector<1x1x2x128xf32>
    %90 = vector.shape_cast %89 : vector<1x1x2x128xf32> to vector<2x128xf32>
    %91 = vector.shape_cast %90 : vector<2x128xf32> to vector<2x1x128xf32>
    %c0_53 = arith.constant 0 : index
    %c3_54 = arith.constant 3 : index
    %c0_55 = arith.constant 0 : index
    %c0_56 = arith.constant 0 : index
    %92 = vector.load %arg5[%c0_53, %c3_54, %c0_55, %c0_56] : memref<1x4x4x128xf32, #tpu.memory_space<vmem>>, vector<1x1x4x128xf32>
    %93 = vector.shape_cast %92 : vector<1x1x4x128xf32> to vector<4x128xf32>
    %94 = vector.shape_cast %93 : vector<4x128xf32> to vector<1x4x128xf32>
    %c0_57 = arith.constant 0 : index
    %c3_58 = arith.constant 3 : index
    %c0_59 = arith.constant 0 : index
    %c0_60 = arith.constant 0 : index
    %95 = vector.load %arg6[%c0_57, %c3_58, %c0_59, %c0_60] : memref<1x4x4x128xf32, #tpu.memory_space<vmem>>, vector<1x1x4x128xf32>
    %96 = vector.shape_cast %95 : vector<1x1x4x128xf32> to vector<4x128xf32>
    %97 = vector.shape_cast %96 : vector<4x128xf32> to vector<1x4x128xf32>
    %98 = vector.broadcast %88 : vector<2x1x128xf32> to vector<2x4x128xf32>
    %99 = vector.broadcast %94 : vector<1x4x128xf32> to vector<2x4x128xf32>
    %100 = arith.mulf %98, %99 : vector<2x4x128xf32>
    %101 = arith.addf %77, %100 : vector<2x4x128xf32>
    %102 = vector.broadcast %91 : vector<2x1x128xf32> to vector<2x4x128xf32>
    %103 = vector.broadcast %97 : vector<1x4x128xf32> to vector<2x4x128xf32>
    %104 = arith.mulf %102, %103 : vector<2x4x128xf32>
    %105 = arith.subf %101, %104 : vector<2x4x128xf32>
    %106 = vector.broadcast %88 : vector<2x1x128xf32> to vector<2x4x128xf32>
    %107 = vector.broadcast %97 : vector<1x4x128xf32> to vector<2x4x128xf32>
    %108 = arith.mulf %106, %107 : vector<2x4x128xf32>
    %109 = arith.addf %85, %108 : vector<2x4x128xf32>
    %110 = vector.broadcast %91 : vector<2x1x128xf32> to vector<2x4x128xf32>
    %111 = vector.broadcast %94 : vector<1x4x128xf32> to vector<2x4x128xf32>
    %112 = arith.mulf %110, %111 : vector<2x4x128xf32>
    %113 = arith.addf %109, %112 : vector<2x4x128xf32>
    %c0_61 = arith.constant 0 : index
    %c0_62 = arith.constant 0 : index
    %c0_63 = arith.constant 0 : index
    %c0_64 = arith.constant 0 : index
    %114 = vector.load %arg7[%c0_61, %c0_62, %c0_63, %c0_64] : memref<1x2x4x128xf32, #tpu.memory_space<vmem>>, vector<1x2x4x128xf32>
    %115 = vector.shape_cast %114 : vector<1x2x4x128xf32> to vector<2x4x128xf32>
    %116 = vector.shape_cast %105 : vector<2x4x128xf32> to vector<1x2x4x128xf32>
    tpu.vector_store %arg7[%c0_61, %c0_62, %c0_63, %c0_64], %116 {strides = array<i32>} : memref<1x2x4x128xf32, #tpu.memory_space<vmem>>, vector<1x2x4x128xf32>,
    %c0_65 = arith.constant 0 : index
    %c0_66 = arith.constant 0 : index
    %c0_67 = arith.constant 0 : index
    %c0_68 = arith.constant 0 : index
    %117 = vector.load %arg8[%c0_65, %c0_66, %c0_67, %c0_68] : memref<1x2x4x128xf32, #tpu.memory_space<vmem>>, vector<1x2x4x128xf32>
    %118 = vector.shape_cast %117 : vector<1x2x4x128xf32> to vector<2x4x128xf32>
    %119 = vector.shape_cast %113 : vector<2x4x128xf32> to vector<1x2x4x128xf32>
    tpu.vector_store %arg8[%c0_65, %c0_66, %c0_67, %c0_68], %119 {strides = array<i32>} : memref<1x2x4x128xf32, #tpu.memory_space<vmem>>, vector<1x2x4x128xf32>,
    return
  }
  func.func @transform_0(%arg0: i32, %arg1: i32, %arg2: i32) -> (i32, i32, i32, i32) {
    %c0_i32 = arith.constant 0 : i32
    %c0_i32_0 = arith.constant 0 : i32
    return %arg0, %c0_i32, %arg1, %arg2 : i32, i32, i32, i32
  }
  func.func @transform_1(%arg0: i32, %arg1: i32, %arg2: i32) -> (i32, i32, i32, i32) {
    %c0_i32 = arith.constant 0 : i32
    %c0_i32_0 = arith.constant 0 : i32
    return %arg0, %c0_i32, %arg1, %arg2 : i32, i32, i32, i32
  }
  func.func @transform_2(%arg0: i32, %arg1: i32, %arg2: i32) -> (i32, i32, i32, i32) {
    %c0_i32 = arith.constant 0 : i32
    %c0_i32_0 = arith.constant 0 : i32
    %c0_i32_1 = arith.constant 0 : i32
    return %arg0, %c0_i32, %c0_i32_0, %arg2 : i32, i32, i32, i32
  }
  func.func @transform_3(%arg0: i32, %arg1: i32, %arg2: i32) -> (i32, i32, i32, i32) {
    %c0_i32 = arith.constant 0 : i32
    %c0_i32_0 = arith.constant 0 : i32
    %c0_i32_1 = arith.constant 0 : i32
    return %arg0, %c0_i32, %c0_i32_0, %arg2 : i32, i32, i32, i32
  }
  func.func @transform_4(%arg0: i32, %arg1: i32, %arg2: i32) -> (i32, i32, i32, i32) {
    %c0_i32 = arith.constant 0 : i32
    %c0_i32_0 = arith.constant 0 : i32
    return %arg0, %arg1, %c0_i32, %arg2 : i32, i32, i32, i32
  }
  func.func @transform_5(%arg0: i32, %arg1: i32, %arg2: i32) -> (i32, i32, i32, i32) {
    %c0_i32 = arith.constant 0 : i32
    %c0_i32_0 = arith.constant 0 : i32
    return %arg0, %arg1, %c0_i32, %arg2 : i32, i32, i32, i32
  }
}

</mosaic_0001>

<llo_original>
// kernel: tpu_custom_call.1
$region0: #{tpu_custom_call.1}
  #allocation0 [shape = 'u32[]', space=smem, size = 0x4, offset = 0x4, fixed_abs, tag = 'smem constant byte address 0x4 - core index']
  #allocation1 [shape = 'u32[144,128]{1,0:T(1,128)}', space=vmem, size = 0x12000, scoped, tag = 'internal scratch']
  %s0 = inlined_call_operand.hbm [shape: f32[4,4,2,128], index: 0, kind: input, shape index: {}]
  %s1 = inlined_call_operand.hbm [shape: f32[4,4,2,128], index: 1, kind: input, shape index: {}]
  %s2 = inlined_call_operand.hbm [shape: f32[4,4,4,128], index: 2, kind: input, shape index: {}]
  %s3 = inlined_call_operand.hbm [shape: f32[4,4,4,128], index: 3, kind: input, shape index: {}]
  %s4 = inlined_call_operand.hbm [shape: f32[4,2,4,128], index: 4, kind: output, shape index: {0}]
  %s5 = inlined_call_operand.hbm [shape: f32[4,2,4,128], index: 5, kind: output, shape index: {1}]
  %6 = xla_tuple %s4, %s5
  %s7 = sld [smem:[#allocation0]]
  $region73: #{tpu_custom_call.1} parent=0
    _
  %s9 = ssub.s32 1, %s7
  %s10 = scalar_select 0, %s9, %s7
  $region1: #{tpu_custom_call.1} parent=0
    #allocation2 [shape = 'u8[8192]{0}', space=vmem, size = 0x2000, scoped, tag = 'input window, operand 0']
    #allocation3 [shape = 's32[2]{0}', space=sflag, size = 0x8, scoped, tag = 'scoped memory for tpu_custom_call.1']
    #allocation4 [shape = 's32[2]{0}', space=sflag, size = 0x8, scoped, tag = 'scoped memory for tpu_custom_call.1']
    #allocation5 [shape = 'u8[8192]{0}', space=vmem, size = 0x2000, scoped, tag = 'input window, operand 1']
    #allocation6 [shape = 's32[2]{0}', space=sflag, size = 0x8, scoped, tag = 'scoped memory for tpu_custom_call.1']
    #allocation7 [shape = 'u8[16384]{0}', space=vmem, size = 0x4000, scoped, tag = 'input window, operand 2']
    #allocation8 [shape = 'u8[16384]{0}', space=vmem, size = 0x4000, scoped, tag = 'input window, operand 3']
    #allocation9 [shape = 's32[2]{0}', space=sflag, size = 0x8, scoped, tag = 'scoped memory for tpu_custom_call.1']
    #allocation10 [shape = 'u8[8192]{0}', space=vmem, size = 0x2000, scoped, tag = 'output window, operand 0']
    #allocation11 [shape = 'u8[8192]{0}', space=vmem, size = 0x2000, scoped, tag = 'output window, operand 1']
    #allocation12 [shape = 's32[2]{0}', space=sflag, size = 0x8, scoped, tag = 'scoped memory for tpu_custom_call.1']
    %11 = vsyncpa [#allocation3], 0
    %s12 = scalar_lea.sflag [#allocation3], 1
    %13 = vsyncpa %s12, 0
    %14 = vsyncpa [#allocation6], 0
    %s15 = scalar_lea.sflag [#allocation6], 1
    %16 = vsyncpa %s15, 0
    %17 = vsyncpa [#allocation9], 0
    %s18 = scalar_lea.sflag [#allocation9], 1
    %19 = vsyncpa %s18, 0
    %20 = vsyncpa [#allocation4], 0
    %s21 = scalar_lea.sflag [#allocation4], 1
    %22 = vsyncpa %s21, 0
    %23 = vsyncpa [#allocation12], 0
    %s24 = scalar_lea.sflag [#allocation12], 1
    %25 = vsyncpa %s24, 0
    loop: start=0, step=1, limit=6
    $region2: #{tpu_custom_call.1} parent=1 // loop_pre_header
      _
    $region3: #{tpu_custom_call.1} parent=1 // loop_header
      %s27 = sphi 0, %s31
      %p28 = scmp.ge.s32.totalorder %s27, 6
      %s34 = sphi 0, %s53
      %s35 = sphi 0, %s49
      %s36 = sphi 0, %s45
      %s37 = sphi 0, %s34
      %s38 = sphi 0, %s35
      %s39 = sphi 0, %s36
      %s40 = sphi 0, %s37
      %s41 = sphi 0, %s38
      %s42 = sphi 0, %s39
      %s60 = sphi 0, %s62
      %s63 = sphi 0, %s60
      %s64 = sphi 0, %s63
      %s80 = sphi 0, %s64
      %s90 = sphi 0, %s92
      %s93 = sphi 0, %s90
      %s94 = sphi 0, %s93
      %s110 = sphi 0, %s94
      %s118 = sphi 0, %s120
      %s121 = sphi 0, %s118
      %s122 = sphi 0, %s121
      %s138 = sphi 0, %s122
      %s146 = sphi 0, %s148
      %s149 = sphi 0, %s146
      %s150 = sphi 0, %s149
      %s166 = sphi 0, %s150
      %s176 = sphi 0, %s178
      %s179 = sphi 0, %s176
      %s180 = sphi 0, %s179
      %s196 = sphi 0, %s180
      %s206 = sphi 0, %s208
      %s209 = sphi 0, %s206
      %s210 = sphi 0, %s209
      %s226 = sphi 0, %s210
    $region4: #{tpu_custom_call.1} parent=1 // loop_header_branch
      %30 = sbr.rel (%p28) target = $region8
    $region5: #{tpu_custom_call.1} parent=1 // loop_body
      %s32 = ssub.s32 %s27, 1
      %s33 = ssub.s32 %s27, 2
      %s43 = sadd.s32 1, %s36
      %p44 = scmp.ge.s32.totalorder %s43, 1
      %s45 = scalar_select %p44, 0, %s43
      %s46 = sadd.s32 1, %s35
      %s47 = scalar_select %p44, %s46, %s35
      %p48 = scmp.ge.s32.totalorder %s47, 1
      %s49 = scalar_select %p48, 0, %s47
      %s50 = sadd.s32 1, %s34
      %s51 = scalar_select %p48, %s50, %s34
      %p52 = scmp.ge.s32.totalorder %s51, 4
      %s53 = scalar_select %p52, 0, %s51
      %s54 = ssub.s32 %s34, %s53
      %s55 = ssub.s32 %s35, %s49
      %s56 = sor.u32 %s54, %s55
      %s57 = ssub.s32 %s36, %s45
      %s58 = sor.u32 %s56, %s57
      %p59 = scmp.eq.s32.totalorder %s58, 0
      %s61 = sadd.s32 %s60, 1
      %s62 = scalar_select %p59, %s60, %s61
      %p65 = pneg %p59
      %p66 = scmp.eq.s32.totalorder %s27, 3
      %p67 = por %p65, %p66
      %p68 = scmp.ne.s32.totalorder %s60, %s63
      %p69 = scmp.eq.s32.totalorder %s27, 0
      %p70 = por %p68, %p69
      %p71 = scmp.ne.s32.totalorder %s60, %s63
      %p72 = scmp.eq.s32.totalorder %s32, 3
      %p73 = por %p71, %p72
      %p74 = scmp.ne.s32.totalorder %s63, %s64
      %p75 = scmp.eq.s32.totalorder %s32, 0
      %p76 = por %p74, %p75
      %p77 = scmp.ne.s32.totalorder %s63, %s64
      %p78 = scmp.eq.s32.totalorder %s33, 3
      %p79 = por %p77, %p78
      %p81 = scmp.ne.s32.totalorder %s64, %s80
      %p82 = scmp.eq.s32.totalorder %s33, 0
      %p83 = por %p81, %p82
      %s84 = ssub.s32 %s34, %s53
      %s85 = ssub.s32 %s35, %s49
      %s86 = sor.u32 %s84, %s85
      %s87 = ssub.s32 %s36, %s45
      %s88 = sor.u32 %s86, %s87
      %p89 = scmp.eq.s32.totalorder %s88, 0
      %s91 = sadd.s32 %s90, 1
      %s92 = scalar_select %p89, %s90, %s91
      %p95 = pneg %p89
      %p96 = scmp.eq.s32.totalorder %s27, 3
      %p97 = por %p95, %p96
      %p98 = scmp.ne.s32.totalorder %s90, %s93
      %p99 = scmp.eq.s32.totalorder %s27, 0
      %p100 = por %p98, %p99
      %p101 = scmp.ne.s32.totalorder %s90, %s93
      %p102 = scmp.eq.s32.totalorder %s32, 3
      %p103 = por %p101, %p102
      %p104 = scmp.ne.s32.totalorder %s93, %s94
      %p105 = scmp.eq.s32.totalorder %s32, 0
      %p106 = por %p104, %p105
      %p107 = scmp.ne.s32.totalorder %s93, %s94
      %p108 = scmp.eq.s32.totalorder %s33, 3
      %p109 = por %p107, %p108
      %p111 = scmp.ne.s32.totalorder %s94, %s110
      %p112 = scmp.eq.s32.totalorder %s33, 0
      %p113 = por %p111, %p112
      %s114 = ssub.s32 %s34, %s53
      %s115 = ssub.s32 %s36, %s45
      %s116 = sor.u32 %s114, %s115
      %p117 = scmp.eq.s32.totalorder %s116, 0
      %s119 = sadd.s32 %s118, 1
      %s120 = scalar_select %p117, %s118, %s119
      %p123 = pneg %p117
      %p124 = scmp.eq.s32.totalorder %s27, 3
      %p125 = por %p123, %p124
      %p126 = scmp.ne.s32.totalorder %s118, %s121
      %p127 = scmp.eq.s32.totalorder %s27, 0
      %p128 = por %p126, %p127
      %p129 = scmp.ne.s32.totalorder %s118, %s121
      %p130 = scmp.eq.s32.totalorder %s32, 3
      %p131 = por %p129, %p130
      %p132 = scmp.ne.s32.totalorder %s121, %s122
      %p133 = scmp.eq.s32.totalorder %s32, 0
      %p134 = por %p132, %p133
      %p135 = scmp.ne.s32.totalorder %s121, %s122
      %p136 = scmp.eq.s32.totalorder %s33, 3
      %p137 = por %p135, %p136
      %p139 = scmp.ne.s32.totalorder %s122, %s138
      %p140 = scmp.eq.s32.totalorder %s33, 0
      %p141 = por %p139, %p140
      %s142 = ssub.s32 %s34, %s53
      %s143 = ssub.s32 %s36, %s45
      %s144 = sor.u32 %s142, %s143
      %p145 = scmp.eq.s32.totalorder %s144, 0
      %s147 = sadd.s32 %s146, 1
      %s148 = scalar_select %p145, %s146, %s147
      %p151 = pneg %p145
      %p152 = scmp.eq.s32.totalorder %s27, 3
      %p153 = por %p151, %p152
      %p154 = scmp.ne.s32.totalorder %s146, %s149
      %p155 = scmp.eq.s32.totalorder %s27, 0
      %p156 = por %p154, %p155
      %p157 = scmp.ne.s32.totalorder %s146, %s149
      %p158 = scmp.eq.s32.totalorder %s32, 3
      %p159 = por %p157, %p158
      %p160 = scmp.ne.s32.totalorder %s149, %s150
      %p161 = scmp.eq.s32.totalorder %s32, 0
      %p162 = por %p160, %p161
      %p163 = scmp.ne.s32.totalorder %s149, %s150
      %p164 = scmp.eq.s32.totalorder %s33, 3
      %p165 = por %p163, %p164
      %p167 = scmp.ne.s32.totalorder %s150, %s166
      %p168 = scmp.eq.s32.totalorder %s33, 0
      %p169 = por %p167, %p168
      %s170 = ssub.s32 %s34, %s53
      %s171 = ssub.s32 %s35, %s49
      %s172 = sor.u32 %s170, %s171
      %s173 = ssub.s32 %s36, %s45
      %s174 = sor.u32 %s172, %s173
      %p175 = scmp.eq.s32.totalorder %s174, 0
      %s177 = sadd.s32 %s176, 1
      %s178 = scalar_select %p175, %s176, %s177
      %p181 = pneg %p175
      %p182 = scmp.eq.s32.totalorder %s27, 3
      %p183 = por %p181, %p182
      %p184 = scmp.ne.s32.totalorder %s176, %s179
      %p185 = scmp.eq.s32.totalorder %s27, 0
      %p186 = por %p184, %p185
      %p187 = scmp.ne.s32.totalorder %s176, %s179
      %p188 = scmp.eq.s32.totalorder %s32, 3
      %p189 = por %p187, %p188
      %p190 = scmp.ne.s32.totalorder %s179, %s180
      %p191 = scmp.eq.s32.totalorder %s32, 0
      %p192 = por %p190, %p191
      %p193 = scmp.ne.s32.totalorder %s179, %s180
      %p194 = scmp.eq.s32.totalorder %s33, 3
      %p195 = por %p193, %p194
      %p197 = scmp.ne.s32.totalorder %s180, %s196
      %p198 = scmp.eq.s32.totalorder %s33, 0
      %p199 = por %p197, %p198
      %s200 = ssub.s32 %s34, %s53
      %s201 = ssub.s32 %s35, %s49
      %s202 = sor.u32 %s200, %s201
      %s203 = ssub.s32 %s36, %s45
      %s204 = sor.u32 %s202, %s203
      %p205 = scmp.eq.s32.totalorder %s204, 0
      %s207 = sadd.s32 %s206, 1
      %s208 = scalar_select %p205, %s206, %s207
      %p211 = pneg %p205
      %p212 = scmp.eq.s32.totalorder %s27, 3
      %p213 = por %p211, %p212
      %p214 = scmp.ne.s32.totalorder %s206, %s209
      %p215 = scmp.eq.s32.totalorder %s27, 0
      %p216 = por %p214, %p215
      %p217 = scmp.ne.s32.totalorder %s206, %s209
      %p218 = scmp.eq.s32.totalorder %s32, 3
      %p219 = por %p217, %p218
      %p220 = scmp.ne.s32.totalorder %s209, %s210
      %p221 = scmp.eq.s32.totalorder %s32, 0
      %p222 = por %p220, %p221
      %p223 = scmp.ne.s32.totalorder %s209, %s210
      %p224 = scmp.eq.s32.totalorder %s33, 3
      %p225 = por %p223, %p224
      %p227 = scmp.ne.s32.totalorder %s210, %s226
      %p228 = scmp.eq.s32.totalorder %s33, 0
      %p229 = por %p227, %p228
      %p230 = scmp.le.s32.totalorder 1, %s27
      %p231 = scmp.lt.s32.totalorder %s27, 5
      %p232 = pnand %p230, %p231
      %p233 = pneg %p232
      // Predicated region
      $region9: #{tpu_custom_call.1} parent=5 // pred_check
        _
      $region10: #{tpu_custom_call.1} parent=5 // pred_check_branch
        %235 = sbr.rel (%p232) target = $region12
      $region11: #{tpu_custom_call.1} parent=5 // pred_region
        %s236 = ssub.s32 %s27, 1
      $region12: #{tpu_custom_call.1} parent=5 // pred_fallthru
        _
      %p237 = scmp.lt.s32.totalorder %s27, 4
      // Predicated region
      $region13: #{tpu_custom_call.1} parent=5 // pred_check
        %p238 = pneg %p237
      $region14: #{tpu_custom_call.1} parent=5 // pred_check_branch
        %240 = sbr.rel (%p238) target = $region16
      $region15: #{tpu_custom_call.1} parent=5 // pred_region
        // Predicated region
        $region17: #{tpu_custom_call.1} parent=15 // pred_check
          %p241 = pneg %p70
        $region18: #{tpu_custom_call.1} parent=15 // pred_check_branch
          %243 = sbr.rel (%p241) target = $region20
        $region19: #{tpu_custom_call.1} parent=15 // pred_region
          %s244 = sand.u32 %s60, 1
          %s245 = scalar_lea.sflag [#allocation3], %s244
          %s246 = sand.u32 %s60, 1
          %s247 = smul.addr %s246, 8
          %s248 = scalar_lea.vmem [#allocation2], %s247
          %s250 = ssub.s32 128, 128
          %251 = vsyncadd %s245, %s250
          %s252 = sadd.s32 %s36, %s35
          %s253 = smul.addr %s34, 4
          %s254 = sadd.s32 %s252, %s253
          %s255 = smul.addr %s254, 32
          %s256 = scalar_lea.hbm %s0, %s255
          %s257 = sshll.u32 %s248, 4
          %s258 = int_to_ptr.vmem [resolvable:$true] %s257
          %263 = dma.hbm_to_vmem [thread:$0]  %s256, 128, %s258, %s245, 32, 32, 2
        $region20: #{tpu_custom_call.1} parent=15 // pred_fallthru
          _
        // Predicated region
        $region21: #{tpu_custom_call.1} parent=15 // pred_check
          %p264 = pneg %p100
        $region22: #{tpu_custom_call.1} parent=15 // pred_check_branch
          %266 = sbr.rel (%p264) target = $region24
        $region23: #{tpu_custom_call.1} parent=15 // pred_region
          %s267 = sand.u32 %s27, 1
          %s268 = scalar_lea.sflag [#allocation6], %s267
          %s269 = sand.u32 %s90, 1
          %s270 = smul.addr %s269, 8
          %s271 = scalar_lea.vmem [#allocation5], %s270
          %s273 = ssub.s32 128, 128
          %274 = vsyncadd %s268, %s273
          %s275 = sadd.s32 %s36, %s35
          %s276 = smul.addr %s34, 4
          %s277 = sadd.s32 %s275, %s276
          %s278 = smul.addr %s277, 32
          %s279 = scalar_lea.hbm %s1, %s278
          %s280 = sshll.u32 %s271, 4
          %s281 = int_to_ptr.vmem [resolvable:$true] %s280
          %286 = dma.hbm_to_vmem [thread:$0]  %s279, 128, %s281, %s268, 32, 32, 2
        $region24: #{tpu_custom_call.1} parent=15 // pred_fallthru
          _
        // Predicated region
        $region25: #{tpu_custom_call.1} parent=15 // pred_check
          %p287 = pneg %p128
        $region26: #{tpu_custom_call.1} parent=15 // pred_check_branch
          %289 = sbr.rel (%p287) target = $region28
        $region27: #{tpu_custom_call.1} parent=15 // pred_region
          %s290 = sand.u32 %s27, 1
          %s291 = scalar_lea.sflag [#allocation6], %s290
          %s292 = sand.u32 %s118, 1
          %s293 = smul.addr %s292, 16
          %s294 = scalar_lea.vmem [#allocation7], %s293
          %s296 = ssub.s32 256, 256
          %297 = vsyncadd %s291, %s296
          %s298 = smul.addr %s34, 4
          %s299 = sadd.s32 %s36, %s298
          %s300 = smul.addr %s299, 64
          %s301 = scalar_lea.hbm %s2, %s300
          %s302 = sshll.u32 %s294, 4
          %s303 = int_to_ptr.vmem [resolvable:$true] %s302
          %308 = dma.hbm_to_vmem [thread:$0]  %s301, 256, %s303, %s291, 64, 64, 4
        $region28: #{tpu_custom_call.1} parent=15 // pred_fallthru
          _
        // Predicated region
        $region29: #{tpu_custom_call.1} parent=15 // pred_check
          %p309 = pneg %p156
        $region30: #{tpu_custom_call.1} parent=15 // pred_check_branch
          %311 = sbr.rel (%p309) target = $region32
        $region31: #{tpu_custom_call.1} parent=15 // pred_region
          %s312 = sand.u32 %s146, 1
          %s313 = scalar_lea.sflag [#allocation9], %s312
          %s314 = sand.u32 %s146, 1
          %s315 = smul.addr %s314, 16
          %s316 = scalar_lea.vmem [#allocation8], %s315
          %s318 = ssub.s32 256, 256
          %319 = vsyncadd %s313, %s318
          %s320 = smul.addr %s34, 4
          %s321 = sadd.s32 %s36, %s320
          %s322 = smul.addr %s321, 64
          %s323 = scalar_lea.hbm %s3, %s322
          %s324 = sshll.u32 %s316, 4
          %s325 = int_to_ptr.vmem [resolvable:$true] %s324
          %330 = dma.hbm_to_vmem [thread:$0]  %s323, 256, %s325, %s313, 64, 64, 4
        $region32: #{tpu_custom_call.1} parent=15 // pred_fallthru
          _
      $region16: #{tpu_custom_call.1} parent=5 // pred_fallthru
        _
      %p331 = scmp.le.s32.totalorder 1, %s27
      %p332 = scmp.lt.s32.totalorder %s27, 5
      %p333 = pnand %p331, %p332
      %p334 = pneg %p333
      // Predicated region
      $region33: #{tpu_custom_call.1} parent=5 // pred_check
        _
      $region34: #{tpu_custom_call.1} parent=5 // pred_check_branch
        %336 = sbr.rel (%p333) target = $region36
      $region35: #{tpu_custom_call.1} parent=5 // pred_region
        %s337 = ssub.s32 %s27, 1
        %s338 = sand.u32 %s63, 1
        %s339 = scalar_lea.sflag [#allocation3], %s338
        %s340 = sand.u32 %s63, 1
        %s341 = smul.addr %s340, 8
        %s342 = scalar_lea.vmem [#allocation2], %s341
        // Predicated region
        $region37: #{tpu_custom_call.1} parent=35 // pred_check
          %p343 = pneg %p76
        $region38: #{tpu_custom_call.1} parent=35 // pred_check_branch
          %345 = sbr.rel (%p343) target = $region40
        $region39: #{tpu_custom_call.1} parent=35 // pred_region
          %346 = dma.done %s339, 128
        $region40: #{tpu_custom_call.1} parent=35 // pred_fallthru
          _
        %s347 = sand.u32 %s32, 1
        %s348 = scalar_lea.sflag [#allocation6], %s347
        %s349 = sand.u32 %s93, 1
        %s350 = smul.addr %s349, 8
        %s351 = scalar_lea.vmem [#allocation5], %s350
        // Predicated region
        $region41: #{tpu_custom_call.1} parent=35 // pred_check
          %p352 = pneg %p106
        $region42: #{tpu_custom_call.1} parent=35 // pred_check_branch
          %354 = sbr.rel (%p352) target = $region44
        $region43: #{tpu_custom_call.1} parent=35 // pred_region
          %355 = dma.done %s348, 128
        $region44: #{tpu_custom_call.1} parent=35 // pred_fallthru
          _
        %s356 = sand.u32 %s32, 1
        %s357 = scalar_lea.sflag [#allocation6], %s356
        %s358 = sand.u32 %s121, 1
        %s359 = smul.addr %s358, 16
        %s360 = scalar_lea.vmem [#allocation7], %s359
        // Predicated region
        $region45: #{tpu_custom_call.1} parent=35 // pred_check
          %p361 = pneg %p134
        $region46: #{tpu_custom_call.1} parent=35 // pred_check_branch
          %363 = sbr.rel (%p361) target = $region48
        $region47: #{tpu_custom_call.1} parent=35 // pred_region
          %364 = dma.done %s357, 256
        $region48: #{tpu_custom_call.1} parent=35 // pred_fallthru
          _
        %s365 = sand.u32 %s149, 1
        %s366 = scalar_lea.sflag [#allocation9], %s365
        %s367 = sand.u32 %s149, 1
        %s368 = smul.addr %s367, 16
        %s369 = scalar_lea.vmem [#allocation8], %s368
        // Predicated region
        $region49: #{tpu_custom_call.1} parent=35 // pred_check
          %p370 = pneg %p162
        $region50: #{tpu_custom_call.1} parent=35 // pred_check_branch
          %372 = sbr.rel (%p370) target = $region52
        $region51: #{tpu_custom_call.1} parent=35 // pred_region
          %373 = dma.done %s366, 256
        $region52: #{tpu_custom_call.1} parent=35 // pred_fallthru
          _
        %s374 = sand.u32 %s63, 1
        %s375 = scalar_lea.sflag [#allocation3], %s374
        %s376 = sand.u32 %s63, 1
        %s377 = smul.addr %s376, 8
        %s378 = scalar_lea.vmem [#allocation2], %s377
        %p379 = pneg %p76
        %p380 = pneg %p73
        %s381 = sand.u32 %s32, 1
        %s382 = scalar_lea.sflag [#allocation6], %s381
        %s383 = sand.u32 %s93, 1
        %s384 = smul.addr %s383, 8
        %s385 = scalar_lea.vmem [#allocation5], %s384
        %p386 = pneg %p106
        %p387 = pneg %p103
        %s388 = sand.u32 %s32, 1
        %s389 = scalar_lea.sflag [#allocation6], %s388
        %s390 = sand.u32 %s121, 1
        %s391 = smul.addr %s390, 16
        %s392 = scalar_lea.vmem [#allocation7], %s391
        %p393 = pneg %p134
        %p394 = pneg %p131
        %s395 = sand.u32 %s149, 1
        %s396 = scalar_lea.sflag [#allocation9], %s395
        %s397 = sand.u32 %s149, 1
        %s398 = smul.addr %s397, 16
        %s399 = scalar_lea.vmem [#allocation8], %s398
        %p400 = pneg %p162
        %p401 = pneg %p159
        %p402 = pneg %p192
        %p403 = pneg %p189
        %s404 = sand.u32 %s179, 1
        %s405 = scalar_lea.sflag [#allocation4], %s404
        %s406 = sand.u32 %s179, 1
        %s407 = smul.addr %s406, 8
        %s408 = scalar_lea.vmem [#allocation10], %s407
        %p409 = pneg %p222
        %p410 = pneg %p219
        %s411 = sand.u32 %s209, 1
        %s412 = scalar_lea.sflag [#allocation12], %s411
        %s413 = sand.u32 %s209, 1
        %s414 = smul.addr %s413, 8
        %s415 = scalar_lea.vmem [#allocation11], %s414
        %s416 = smul.u32 2, %s38
        %s417 = smul.u32 2, %s38
        %v418 = vld [vmem:[%s342] sm:$0x3]
        %v421 = vunpack.c.l.s4 1966171168
        %v422 = vunpack.c.0.s8 %v421
        %v423 = vlaneseq
        %v424 = vshrl.u32 %v423, 7
        %v425 = vsub.s32 %v422, %v424
        %v426 = vrot.slane %v418, %v425
        %v427 = vcombine.high %v426, %v426
        %v429 = vunpack.c.l.s4 1966171168
        %v430 = vunpack.c.0.s8 %v429
        %v431 = vlaneseq
        %v432 = vshrl.u32 %v431, 7
        %v433 = vsub.s32 %v430, %v432
        %v434 = vrot.slane %v426, %v433
        %v436 = vunpack.c.l.s4 1966171168
        %v437 = vunpack.c.0.s8 %v436
        %v438 = vlaneseq
        %v439 = vshrl.u32 %v438, 7
        %v440 = vsub.s32 %v437, %v439
        %v441 = vrot.slane %v427, %v440
        %v442 = vld [vmem:[%s351] sm:$0x3]
        %v445 = vunpack.c.l.s4 1966171168
        %v446 = vunpack.c.0.s8 %v445
        %v447 = vlaneseq
        %v448 = vshrl.u32 %v447, 7
        %v449 = vsub.s32 %v446, %v448
        %v450 = vrot.slane %v442, %v449
        %v451 = vcombine.high %v450, %v450
        %v453 = vunpack.c.l.s4 1966171168
        %v454 = vunpack.c.0.s8 %v453
        %v455 = vlaneseq
        %v456 = vshrl.u32 %v455, 7
        %v457 = vsub.s32 %v454, %v456
        %v458 = vrot.slane %v450, %v457
        %v460 = vunpack.c.l.s4 1966171168
        %v461 = vunpack.c.0.s8 %v460
        %v462 = vlaneseq
        %v463 = vshrl.u32 %v462, 7
        %v464 = vsub.s32 %v461, %v463
        %v465 = vrot.slane %v451, %v464
        %v466 = vld [vmem:[%s360] sm:$0xf]
        %v467 = vld [vmem:[%s369] sm:$0xf]
        %v468 = vlaneseq
        %v469 = vshrl.u32 %v468, 7
        %v470 = vsub.s32 0, %v469
        %v471 = vrot.slane %v434, %v470
        %v472 = vlaneseq
        %v473 = vshrl.u32 %v472, 7
        %v474 = vsub.s32 0, %v473
        %v475 = vrot.slane %v441, %v474
        %v478 = vmul.f32 %v471, %v466
        %v479 = vmul.f32 %v475, %v466
        %v480 = vadd.f32 %v478, 0.0
        %v481 = vadd.f32 %v479, 0.0
        %v482 = vlaneseq
        %v483 = vshrl.u32 %v482, 7
        %v484 = vsub.s32 0, %v483
        %v485 = vrot.slane %v458, %v484
        %v486 = vlaneseq
        %v487 = vshrl.u32 %v486, 7
        %v488 = vsub.s32 0, %v487
        %v489 = vrot.slane %v465, %v488
        %v492 = vmul.f32 %v485, %v467
        %v493 = vmul.f32 %v489, %v467
        %v494 = vsub.f32 %v480, %v492
        %v495 = vsub.f32 %v481, %v493
        %v496 = vmul.f32 %v471, %v467
        %v497 = vmul.f32 %v475, %v467
        %v498 = vadd.f32 %v496, 0.0
        %v499 = vadd.f32 %v497, 0.0
        %v500 = vmul.f32 %v485, %v466
        %v501 = vmul.f32 %v489, %v466
        %v502 = vadd.f32 %v498, %v500
        %v503 = vadd.f32 %v499, %v501
        %s504 = scalar_lea.vmem %s342, 2 [#allocation2]
        %v505 = vld [vmem:[%s504] sm:$0x3]
        %v508 = vunpack.c.l.s4 1966171168
        %v509 = vunpack.c.0.s8 %v508
        %v510 = vlaneseq
        %v511 = vshrl.u32 %v510, 7
        %v512 = vsub.s32 %v509, %v511
        %v513 = vrot.slane %v505, %v512
        %v514 = vcombine.high %v513, %v513
        %v516 = vunpack.c.l.s4 1966171168
        %v517 = vunpack.c.0.s8 %v516
        %v518 = vlaneseq
        %v519 = vshrl.u32 %v518, 7
        %v520 = vsub.s32 %v517, %v519
        %v521 = vrot.slane %v513, %v520
        %v523 = vunpack.c.l.s4 1966171168
        %v524 = vunpack.c.0.s8 %v523
        %v525 = vlaneseq
        %v526 = vshrl.u32 %v525, 7
        %v527 = vsub.s32 %v524, %v526
        %v528 = vrot.slane %v514, %v527
        %s529 = scalar_lea.vmem %s351, 2 [#allocation5]
        %v530 = vld [vmem:[%s529] sm:$0x3]
        %v533 = vunpack.c.l.s4 1966171168
        %v534 = vunpack.c.0.s8 %v533
        %v535 = vlaneseq
        %v536 = vshrl.u32 %v535, 7
        %v537 = vsub.s32 %v534, %v536
        %v538 = vrot.slane %v530, %v537
        %v539 = vcombine.high %v538, %v538
        %v541 = vunpack.c.l.s4 1966171168
        %v542 = vunpack.c.0.s8 %v541
        %v543 = vlaneseq
        %v544 = vshrl.u32 %v543, 7
        %v545 = vsub.s32 %v542, %v544
        %v546 = vrot.slane %v538, %v545
        %v548 = vunpack.c.l.s4 1966171168
        %v549 = vunpack.c.0.s8 %v548
        %v550 = vlaneseq
        %v551 = vshrl.u32 %v550, 7
        %v552 = vsub.s32 %v549, %v551
        %v553 = vrot.slane %v539, %v552
        %s554 = scalar_lea.vmem %s360, 4 [#allocation7]
        %v555 = vld [vmem:[%s554] sm:$0xf]
        %s556 = scalar_lea.vmem %s369, 4 [#allocation8]
        %v557 = vld [vmem:[%s556] sm:$0xf]
        %v558 = vlaneseq
        %v559 = vshrl.u32 %v558, 7
        %v560 = vsub.s32 0, %v559
        %v561 = vrot.slane %v521, %v560
        %v562 = vlaneseq
        %v563 = vshrl.u32 %v562, 7
        %v564 = vsub.s32 0, %v563
        %v565 = vrot.slane %v528, %v564
        %v568 = vmul.f32 %v561, %v555
        %v569 = vmul.f32 %v565, %v555
        %v570 = vadd.f32 %v494, %v568
        %v571 = vadd.f32 %v495, %v569
        %v572 = vlaneseq
        %v573 = vshrl.u32 %v572, 7
        %v574 = vsub.s32 0, %v573
        %v575 = vrot.slane %v546, %v574
        %v576 = vlaneseq
        %v577 = vshrl.u32 %v576, 7
        %v578 = vsub.s32 0, %v577
        %v579 = vrot.slane %v553, %v578
        %v582 = vmul.f32 %v575, %v557
        %v583 = vmul.f32 %v579, %v557
        %v584 = vsub.f32 %v570, %v582
        %v585 = vsub.f32 %v571, %v583
        %v586 = vmul.f32 %v561, %v557
        %v587 = vmul.f32 %v565, %v557
        %v588 = vadd.f32 %v502, %v586
        %v589 = vadd.f32 %v503, %v587
        %v590 = vmul.f32 %v575, %v555
        %v591 = vmul.f32 %v579, %v555
        %v592 = vadd.f32 %v588, %v590
        %v593 = vadd.f32 %v589, %v591
        %s594 = scalar_lea.vmem %s342, 4 [#allocation2]
        %v595 = vld [vmem:[%s594] sm:$0x3]
        %v598 = vunpack.c.l.s4 1966171168
        %v599 = vunpack.c.0.s8 %v598
        %v600 = vlaneseq
        %v601 = vshrl.u32 %v600, 7
        %v602 = vsub.s32 %v599, %v601
        %v603 = vrot.slane %v595, %v602
        %v604 = vcombine.high %v603, %v603
        %v606 = vunpack.c.l.s4 1966171168
        %v607 = vunpack.c.0.s8 %v606
        %v608 = vlaneseq
        %v609 = vshrl.u32 %v608, 7
        %v610 = vsub.s32 %v607, %v609
        %v611 = vrot.slane %v603, %v610
        %v613 = vunpack.c.l.s4 1966171168
        %v614 = vunpack.c.0.s8 %v613
        %v615 = vlaneseq
        %v616 = vshrl.u32 %v615, 7
        %v617 = vsub.s32 %v614, %v616
        %v618 = vrot.slane %v604, %v617
        %s619 = scalar_lea.vmem %s351, 4 [#allocation5]
        %v620 = vld [vmem:[%s619] sm:$0x3]
        %v623 = vunpack.c.l.s4 1966171168
        %v624 = vunpack.c.0.s8 %v623
        %v625 = vlaneseq
        %v626 = vshrl.u32 %v625, 7
        %v627 = vsub.s32 %v624, %v626
        %v628 = vrot.slane %v620, %v627
        %v629 = vcombine.high %v628, %v628
        %v631 = vunpack.c.l.s4 1966171168
        %v632 = vunpack.c.0.s8 %v631
        %v633 = vlaneseq
        %v634 = vshrl.u32 %v633, 7
        %v635 = vsub.s32 %v632, %v634
        %v636 = vrot.slane %v628, %v635
        %v638 = vunpack.c.l.s4 1966171168
        %v639 = vunpack.c.0.s8 %v638
        %v640 = vlaneseq
        %v641 = vshrl.u32 %v640, 7
        %v642 = vsub.s32 %v639, %v641
        %v643 = vrot.slane %v629, %v642
        %s644 = scalar_lea.vmem %s360, 8 [#allocation7]
        %v645 = vld [vmem:[%s644] sm:$0xf]
        %s646 = scalar_lea.vmem %s369, 8 [#allocation8]
        %v647 = vld [vmem:[%s646] sm:$0xf]
        %v648 = vlaneseq
        %v649 = vshrl.u32 %v648, 7
        %v650 = vsub.s32 0, %v649
        %v651 = vrot.slane %v611, %v650
        %v652 = vlaneseq
        %v653 = vshrl.u32 %v652, 7
        %v654 = vsub.s32 0, %v653
        %v655 = vrot.slane %v618, %v654
        %v658 = vmul.f32 %v651, %v645
        %v659 = vmul.f32 %v655, %v645
        %v660 = vadd.f32 %v584, %v658
        %v661 = vadd.f32 %v585, %v659
        %v662 = vlaneseq
        %v663 = vshrl.u32 %v662, 7
        %v664 = vsub.s32 0, %v663
        %v665 = vrot.slane %v636, %v664
        %v666 = vlaneseq
        %v667 = vshrl.u32 %v666, 7
        %v668 = vsub.s32 0, %v667
        %v669 = vrot.slane %v643, %v668
        %v672 = vmul.f32 %v665, %v647
        %v673 = vmul.f32 %v669, %v647
        %v674 = vsub.f32 %v660, %v672
        %v675 = vsub.f32 %v661, %v673
        %v676 = vmul.f32 %v651, %v647
        %v677 = vmul.f32 %v655, %v647
        %v678 = vadd.f32 %v592, %v676
        %v679 = vadd.f32 %v593, %v677
        %v680 = vmul.f32 %v665, %v645
        %v681 = vmul.f32 %v669, %v645
        %v682 = vadd.f32 %v678, %v680
        %v683 = vadd.f32 %v679, %v681
        %s684 = scalar_lea.vmem %s342, 6 [#allocation2]
        %v685 = vld [vmem:[%s684] sm:$0x3]
        %v688 = vunpack.c.l.s4 1966171168
        %v689 = vunpack.c.0.s8 %v688
        %v690 = vlaneseq
        %v691 = vshrl.u32 %v690, 7
        %v692 = vsub.s32 %v689, %v691
        %v693 = vrot.slane %v685, %v692
        %v694 = vcombine.high %v693, %v693
        %v696 = vunpack.c.l.s4 1966171168
        %v697 = vunpack.c.0.s8 %v696
        %v698 = vlaneseq
        %v699 = vshrl.u32 %v698, 7
        %v700 = vsub.s32 %v697, %v699
        %v701 = vrot.slane %v693, %v700
        %v703 = vunpack.c.l.s4 1966171168
        %v704 = vunpack.c.0.s8 %v703
        %v705 = vlaneseq
        %v706 = vshrl.u32 %v705, 7
        %v707 = vsub.s32 %v704, %v706
        %v708 = vrot.slane %v694, %v707
        %s709 = scalar_lea.vmem %s351, 6 [#allocation5]
        %v710 = vld [vmem:[%s709] sm:$0x3]
        %v713 = vunpack.c.l.s4 1966171168
        %v714 = vunpack.c.0.s8 %v713
        %v715 = vlaneseq
        %v716 = vshrl.u32 %v715, 7
        %v717 = vsub.s32 %v714, %v716
        %v718 = vrot.slane %v710, %v717
        %v719 = vcombine.high %v718, %v718
        %v721 = vunpack.c.l.s4 1966171168
        %v722 = vunpack.c.0.s8 %v721
        %v723 = vlaneseq
        %v724 = vshrl.u32 %v723, 7
        %v725 = vsub.s32 %v722, %v724
        %v726 = vrot.slane %v718, %v725
        %v728 = vunpack.c.l.s4 1966171168
        %v729 = vunpack.c.0.s8 %v728
        %v730 = vlaneseq
        %v731 = vshrl.u32 %v730, 7
        %v732 = vsub.s32 %v729, %v731
        %v733 = vrot.slane %v719, %v732
        %s734 = scalar_lea.vmem %s360, 12 [#allocation7]
        %v735 = vld [vmem:[%s734] sm:$0xf]
        %s736 = scalar_lea.vmem %s369, 12 [#allocation8]
        %v737 = vld [vmem:[%s736] sm:$0xf]
        %v738 = vlaneseq
        %v739 = vshrl.u32 %v738, 7
        %v740 = vsub.s32 0, %v739
        %v741 = vrot.slane %v701, %v740
        %v742 = vlaneseq
        %v743 = vshrl.u32 %v742, 7
        %v744 = vsub.s32 0, %v743
        %v745 = vrot.slane %v708, %v744
        %v748 = vmul.f32 %v741, %v735
        %v749 = vmul.f32 %v745, %v735
        %v750 = vadd.f32 %v674, %v748
        %v751 = vadd.f32 %v675, %v749
        %v752 = vlaneseq
        %v753 = vshrl.u32 %v752, 7
        %v754 = vsub.s32 0, %v753
        %v755 = vrot.slane %v726, %v754
        %v756 = vlaneseq
        %v757 = vshrl.u32 %v756, 7
        %v758 = vsub.s32 0, %v757
        %v759 = vrot.slane %v733, %v758
        %v762 = vmul.f32 %v755, %v737
        %v763 = vmul.f32 %v759, %v737
        %v764 = vsub.f32 %v750, %v762
        %v765 = vsub.f32 %v751, %v763
        %v766 = vmul.f32 %v741, %v737
        %v767 = vmul.f32 %v745, %v737
        %v768 = vadd.f32 %v682, %v766
        %v769 = vadd.f32 %v683, %v767
        %v770 = vmul.f32 %v755, %v735
        %v771 = vmul.f32 %v759, %v735
        %v772 = vadd.f32 %v768, %v770
        %v773 = vadd.f32 %v769, %v771
        %774 = vst [vmem:[%s408] sm:$0xf] %v764
        %775 = vst [vmem:[%s408 + $0x4] sm:$0xf] %v765
        %776 = vst [vmem:[%s415] sm:$0xf] %v772
        %777 = vst [vmem:[%s415 + $0x4] sm:$0xf] %v773
        %s778 = sand.u32 %s179, 1
        %s779 = scalar_lea.sflag [#allocation4], %s778
        %s780 = sand.u32 %s179, 1
        %s781 = smul.addr %s780, 8
        %s782 = scalar_lea.vmem [#allocation10], %s781
        %s783 = sand.u32 %s209, 1
        %s784 = scalar_lea.sflag [#allocation12], %s783
        %s785 = sand.u32 %s209, 1
        %s786 = smul.addr %s785, 8
        %s787 = scalar_lea.vmem [#allocation11], %s786
        // Predicated region
        $region53: #{tpu_custom_call.1} parent=35 // pred_check
          %p788 = pneg %p189
        $region54: #{tpu_custom_call.1} parent=35 // pred_check_branch
          %790 = sbr.rel (%p788) target = $region56
        $region55: #{tpu_custom_call.1} parent=35 // pred_region
          %s791 = smul.u32 2, %s38
          %s793 = ssub.s32 128, 128
          %794 = vsyncadd %s779, %s793
          %s795 = sadd.s32 %s39, %s791
          %s796 = smul.addr %s37, 2
          %s797 = sadd.s32 %s795, %s796
          %s798 = smul.addr %s797, 64
          %s799 = scalar_lea.hbm %s4, %s798
          %s800 = sshll.u32 %s782, 4
          %s801 = int_to_ptr.vmem [resolvable:$true] %s800
          %806 = dma.vmem_to_hbm [thread:$0]  %s801, 128, %s799, %s779, 64, 64, 4
        $region56: #{tpu_custom_call.1} parent=35 // pred_fallthru
          _
        // Predicated region
        $region57: #{tpu_custom_call.1} parent=35 // pred_check
          %p807 = pneg %p219
        $region58: #{tpu_custom_call.1} parent=35 // pred_check_branch
          %809 = sbr.rel (%p807) target = $region60
        $region59: #{tpu_custom_call.1} parent=35 // pred_region
          %s810 = smul.u32 2, %s38
          %s812 = ssub.s32 128, 128
          %813 = vsyncadd %s784, %s812
          %s814 = sadd.s32 %s39, %s810
          %s815 = smul.addr %s37, 2
          %s816 = sadd.s32 %s814, %s815
          %s817 = smul.addr %s816, 64
          %s818 = scalar_lea.hbm %s5, %s817
          %s819 = sshll.u32 %s787, 4
          %s820 = int_to_ptr.vmem [resolvable:$true] %s819
          %825 = dma.vmem_to_hbm [thread:$0]  %s820, 128, %s818, %s784, 64, 64, 4
        $region60: #{tpu_custom_call.1} parent=35 // pred_fallthru
          _
      $region36: #{tpu_custom_call.1} parent=5 // pred_fallthru
        _
      %p826 = scmp.le.s32.totalorder 2, %s27
      // Predicated region
      $region61: #{tpu_custom_call.1} parent=5 // pred_check
        %p827 = pneg %p826
      $region62: #{tpu_custom_call.1} parent=5 // pred_check_branch
        %829 = sbr.rel (%p827) target = $region64
      $region63: #{tpu_custom_call.1} parent=5 // pred_region
        %s830 = ssub.s32 %s27, 2
        // Predicated region
        $region65: #{tpu_custom_call.1} parent=63 // pred_check
          %p831 = pneg %p195
        $region66: #{tpu_custom_call.1} parent=63 // pred_check_branch
          %833 = sbr.rel (%p831) target = $region68
        $region67: #{tpu_custom_call.1} parent=63 // pred_region
          %s834 = sand.u32 %s180, 1
          %s835 = scalar_lea.sflag [#allocation4], %s834
          %s836 = sand.u32 %s180, 1
          %s837 = smul.addr %s836, 8
          %s838 = scalar_lea.vmem [#allocation10], %s837
          %839 = dma.done %s835, 128
        $region68: #{tpu_custom_call.1} parent=63 // pred_fallthru
          _
        // Predicated region
        $region69: #{tpu_custom_call.1} parent=63 // pred_check
          %p840 = pneg %p225
        $region70: #{tpu_custom_call.1} parent=63 // pred_check_branch
          %842 = sbr.rel (%p840) target = $region72
        $region71: #{tpu_custom_call.1} parent=63 // pred_region
          %s843 = sand.u32 %s210, 1
          %s844 = scalar_lea.sflag [#allocation12], %s843
          %s845 = sand.u32 %s210, 1
          %s846 = smul.addr %s845, 8
          %s847 = scalar_lea.vmem [#allocation11], %s846
          %848 = dma.done %s844, 128
        $region72: #{tpu_custom_call.1} parent=63 // pred_fallthru
          _
      $region64: #{tpu_custom_call.1} parent=5 // pred_fallthru
        _
    $region6: #{tpu_custom_call.1} parent=1 // loop_footer
      %s31 = sadd.s32 1, %s27
    $region7: #{tpu_custom_call.1} parent=1 // loop_footer_branch
      %26 = sbr.rel target = $region3
    $region8: #{tpu_custom_call.1} parent=1 // loop_exit
      _
    %849 = vsyncpa [#allocation3], 1
    %s850 = scalar_lea.sflag [#allocation3], 1
    %851 = vsyncpa %s850, 1
    %852 = vsyncpa [#allocation6], 1
    %s853 = scalar_lea.sflag [#allocation6], 1
    %854 = vsyncpa %s853, 1
    %855 = vsyncpa [#allocation9], 1
    %s856 = scalar_lea.sflag [#allocation9], 1
    %857 = vsyncpa %s856, 1
    %858 = vsyncpa [#allocation4], 1
    %s859 = scalar_lea.sflag [#allocation4], 1
    %860 = vsyncpa %s859, 1
    %861 = vsyncpa [#allocation12], 1
    %s862 = scalar_lea.sflag [#allocation12], 1
    %863 = vsyncpa %s862, 1

</llo_original>
